<compile_context>
chip_gen: v5e
topology: v5e:2x2
jax: 0.10.0
libtpu: 0.0.40
codegen_flags: <defaults>
</compile_context>

<pallas_src>
import functools
import math

import jax
import jax.numpy as jnp
from jax.experimental import pallas as pl
from jax.experimental.pallas import tpu as pltpu

GAMMA = math.exp(-1.0)     # gamma = e^{-1}
LOG_GAMMA = -1.0           # log(gamma)
_NEG_BIG = -1e30           # finite "-inf" used for padded class columns


def _round_up(x, m):
    return ((x + m - 1) // m) * m


def _read_kernel(a_ref, v_ref, wa_ref, wv_ref, b_ref,
                 out_ref, psum_ref, lra_ref,
                 *, n_rows, tile_n, ragged):
    i = pl.program_id(0)

    # ---- synthetic forward_eval: logits = a @ Wa + v @ Wv + b -----------------
    # bf16 cast happens in VMEM (no separate concat/cast HBM pass); two MXU
    # matmuls with f32 accumulation. Padded class columns carry bias -1e30 so
    # they vanish from the softmax.
    a_bf = a_ref[...].astype(jnp.bfloat16)
    v_bf = v_ref[...].astype(jnp.bfloat16)
    logits = (jnp.dot(a_bf, wa_ref[...], preferred_element_type=jnp.float32)
              + jnp.dot(v_bf, wv_ref[...], preferred_element_type=jnp.float32)
              + b_ref[...])                                   # (tile_n, C_pad) f32
    out_ref[...] = logits.astype(out_ref.dtype)               # bf16 lane-dense writeback

    # ---- pred = softmax(logits, axis=-1), all elementwise math in f32 ----------
    m = jnp.max(logits, axis=-1, keepdims=True)
    e = jnp.exp(logits - m)                                   # pad cols underflow to 0
    denom = jnp.sum(e, axis=-1, keepdims=True)
    inv_denom = pl.reciprocal(denom, approx=True)             # EUP vrcp (free slot)
    pred = e * inv_denom                                      # (tile_n, C_pad)

    # max_c pred = exp(rowmax - rowmax)/denom = 1/denom, so pred_max == inv_denom
    # and log(pred_max) == -log(denom): no second XLU max reduction needed.
    log_pred_max = -jnp.log(denom)
    term = inv_denom * (1.0 - log_pred_max + LOG_GAMMA)       # (tile_n, 1)

    def _write_partials(mask_rows):
        if mask_rows:
            row = jax.lax.broadcasted_iota(jnp.int32, (tile_n, 1), 0) + i * tile_n
            valid = row < n_rows                              # (tile_n, 1) bool
            p = jnp.where(valid, pred, 0.0)
            t = jnp.where(valid, term, 0.0)
        else:
            p, t = pred, term
        # Per-tile partial sums (no carried accumulator -> batch axis is parallel).
        psum_ref[...] = jnp.sum(p, axis=0, keepdims=True)[None]   # (1, 1, C_pad)
        lra_ref[...] = jnp.sum(t, axis=0, keepdims=True)[None]    # (1, 1, 1)

    if ragged:
        # Only the last tile can contain invalid rows; full tiles skip the
        # iota/mask work entirely.
        @pl.when(i < pl.num_programs(0) - 1)
        def _full():
            _write_partials(False)

        @pl.when(i == pl.num_programs(0) - 1)
        def _last():
            _write_partials(True)
    else:
        _write_partials(False)


def read_forward(a, v, wa, wv, b, *, num_classes, tile_n=1024):
    """Fused synthetic forward_eval + READ loss terms.

    a: (N, Da) f32, v: (N, Dv) f32, wa: (Da, C_pad) bf16, wv: (Dv, C_pad) bf16,
    b: (1, C_pad) f32 (pad columns = -1e30).
    Returns (logits_padded (N, C_pad) bf16, loss_ra (), loss_bal ())."""
    N, Da = a.shape
    Dv = v.shape[1]
    C_pad = wa.shape[1]

    tn = min(tile_n, _round_up(N, 8))
    num_tiles = pl.cdiv(N, tn)
    ragged = (N % tn) != 0

    kernel = functools.partial(_read_kernel, n_rows=N, tile_n=tn, ragged=ragged)

    logits_pad, psum_part, lra_part = pl.pallas_call(
        kernel,
        grid=(num_tiles,),
        in_specs=[
            pl.BlockSpec((tn, Da), lambda i: (i, 0)),        # audio feats: tiled over N
            pl.BlockSpec((tn, Dv), lambda i: (i, 0)),        # video feats: tiled over N
            pl.BlockSpec((Da, C_pad), lambda i: (0, 0)),     # Wa: resident
            pl.BlockSpec((Dv, C_pad), lambda i: (0, 0)),     # Wv: resident
            pl.BlockSpec((1, C_pad), lambda i: (0, 0)),      # bias: resident
        ],
        out_specs=(
            pl.BlockSpec((tn, C_pad), lambda i: (i, 0)),     # bf16 lane-dense logits
            pl.BlockSpec((1, 1, C_pad), lambda i: (i, 0, 0)),  # per-tile p_sum partial
            pl.BlockSpec((1, 1, 1), lambda i: (i, 0, 0)),      # per-tile loss_ra partial
        ),
        out_shape=(
            jax.ShapeDtypeStruct((N, C_pad), jnp.bfloat16),
            jax.ShapeDtypeStruct((num_tiles, 1, C_pad), jnp.float32),
            jax.ShapeDtypeStruct((num_tiles, 1, 1), jnp.float32),
        ),
        compiler_params=pltpu.CompilerParams(
            # No carried accumulators -> the batch axis is truly parallel
            # (lets Mosaic shard tiles across both v7x TensorCores).
            dimension_semantics=("parallel",),
            # v7x-safe (64 MiB physical VMEM); can be raised to 64-96 MiB on
            # v5e/v6e for much larger D/C_pad if needed.
            vmem_limit_bytes=48 * 1024 * 1024,
        ),
        cost_estimate=pl.CostEstimate(
            flops=2 * N * (Da + Dv) * C_pad,
            transcendentals=2 * N * C_pad,
            bytes_accessed=(N * (Da + Dv) * 4            # f32 a, v reads
                            + (Da + Dv) * C_pad * 2      # bf16 weights
                            + C_pad * 4                  # bias
                            + N * C_pad * 2              # bf16 logits writeback
                            + num_tiles * (C_pad + 1) * 4),  # partials
        ),
    )(a, v, wa, wv, b)

    # Tiny finalize in plain JAX (fused into the same jit): reduce the per-tile
    # partials and form both losses.  Pad classes contributed exactly 0 to p_sum.
    p_sum = jnp.sum(psum_part, axis=(0, 1))[:num_classes]      # (C,)
    log_q = jax.nn.log_softmax(p_sum)
    loss_bal = -jnp.sum(jnp.exp(log_q) * log_q)
    loss_ra = jnp.sum(lra_part) / N                             # mean over batch
    return logits_pad, loss_ra, loss_bal


class READPallas:
    """JAX/Pallas analogue of READ.forward (Eq. 7 forward/loss only).

    adapt_flag=True  -> compute outputs + (loss_ra, loss_bal); since no parameter
                        update is performed, the post-"update" eval equals the
                        forward and `outputs` is reused (no redundant 2nd launch).
    adapt_flag=False -> eval only, loss = (0, 0).
    """

    def __init__(self, wa, wv, b, steps=1, episodic=False, tile_n=1024):
        assert steps > 0, 'tent requires >= 1 step(s) to forward and update'
        Da, C = wa.shape
        assert wv.shape[1] == C
        Dv = wv.shape[0]
        self.num_classes = C
        c_pad = _round_up(max(C, 128), 128)

        # Pad the class axis to a 128-lane multiple once at init; pad bias = -1e30
        # masks the extra classes out of the softmax.  Weights live as bf16 (MXU
        # operands); bias and all elementwise math stay f32.
        wa32 = jnp.asarray(wa, jnp.float32)
        wv32 = jnp.asarray(wv, jnp.float32)
        self.wa = jnp.zeros((Da, c_pad), jnp.float32).at[:, :C].set(wa32).astype(jnp.bfloat16)
        self.wv = jnp.zeros((Dv, c_pad), jnp.float32).at[:, :C].set(wv32).astype(jnp.bfloat16)
        self.b = jnp.full((1, c_pad), _NEG_BIG, jnp.float32).at[0, :C].set(
            jnp.asarray(b, jnp.float32))

        self.steps = steps
        self.episodic = episodic
        self._fwd = jax.jit(functools.partial(read_forward,
                                              num_classes=C, tile_n=tile_n))

    def __call__(self, x, adapt_flag):
        a, v = x
        outputs_pair, loss = None, None
        for _ in range(self.steps):
            logits_pad, loss_ra, loss_bal = self._fwd(a, v, self.wa, self.wv, self.b)
            # Slice the padded classes OFF outside the jitted hot path (the padded
            # bf16 logits are what the kernel writes; this keeps the extra copy
            # out of the kernel's HBM traffic).
            outputs = logits_pad[:, :self.num_classes]
            if adapt_flag:
                # TODO(synk): the backward pass + SGD/GradScaler parameter update of
                # forward_and_adapt has no clean single-kernel Pallas equivalent; with
                # unchanged params the post-update eval equals the forward, so we reuse
                # `outputs` instead of launching a redundant second kernel.
                outputs_pair = (outputs, outputs)
                loss = (loss_ra, loss_bal)
            else:
                outputs_pair = (outputs, outputs)
                loss = (0, 0)
        return outputs_pair, loss


if __name__ == "__main__":
    key = jax.random.PRNGKey(0)
    k_a, k_v, k_wa, k_wv, k_b = jax.random.split(key, 5)

    N, Da, Dv, C = 8, 32, 32, 32          # small synthetic shapes
    a = jax.random.normal(k_a, (N, Da), dtype=jnp.float32)
    v = jax.random.normal(k_v, (N, Dv), dtype=jnp.float32)
    wa = jax.random.normal(k_wa, (Da, C), dtype=jnp.float32) * 0.1
    wv = jax.random.normal(k_wv, (Dv, C), dtype=jnp.float32) * 0.1
    b = jax.random.normal(k_b, (C,), dtype=jnp.float32) * 0.01

    read = READPallas(wa, wv, b, steps=1, episodic=False)
    (out1, out2), (loss_ra, loss_bal) = read((a, v), adapt_flag=True)
    jax.block_until_ready((out1, out2, loss_ra, loss_bal))

    # plain-JAX reference (bf16 matmul operands, f32 everything else)
    ab = a.astype(jnp.bfloat16).astype(jnp.float32)
    vb = v.astype(jnp.bfloat16).astype(jnp.float32)
    wab = wa.astype(jnp.bfloat16).astype(jnp.float32)
    wvb = wv.astype(jnp.bfloat16).astype(jnp.float32)
    logits_ref = ab @ wab + vb @ wvb + b
    pred_ref = jax.nn.softmax(logits_ref, axis=-1)
    p_sum_ref = pred_ref.sum(axis=0)
    lbal_ref = -(jax.nn.softmax(p_sum_ref, axis=0)
                 * jax.nn.log_softmax(p_sum_ref, axis=0)).sum()
    pmax_ref = pred_ref.max(axis=-1)
    lra_ref = (pmax_ref * (1.0 - jnp.log(pmax_ref) + math.log(GAMMA))).mean()

    assert out1.shape == (N, C)
    # logits are returned in bf16 now -> slightly looser tolerance than f32
    assert jnp.allclose(out1.astype(jnp.float32), logits_ref, atol=3e-2, rtol=3e-2)
    assert jnp.allclose(loss_ra, lra_ref, atol=2e-2, rtol=2e-2)
    assert jnp.allclose(loss_bal, lbal_ref, atol=2e-2, rtol=2e-2)

    print("KERNEL_OK")
</pallas_src>

<mosaic_0001>
module attributes {stable_mosaic.version = 11 : i64} {
  func.func @_read_kernel(%arg0: i32, %arg1: memref<8x32xf32, #tpu.memory_space<vmem>>, %arg2: memref<8x32xf32, #tpu.memory_space<vmem>>, %arg3: memref<32x128xbf16, #tpu.memory_space<vmem>>, %arg4: memref<32x128xbf16, #tpu.memory_space<vmem>>, %arg5: memref<1x128xf32, #tpu.memory_space<vmem>>, %arg6: memref<8x128xbf16, #tpu.memory_space<vmem>>, %arg7: memref<1x1x128xf32, #tpu.memory_space<vmem>>, %arg8: memref<1x1x1xf32, #tpu.memory_space<vmem>>) attributes {dimension_semantics = [#tpu.dimension_semantics<parallel>], iteration_bounds = array<i64: 1>, scalar_prefetch = 0 : i64, scratch_operands = 0 : i64, tpu.core_type = #tpu.core_type<tc>, window_params = [{transform_indices = @transform_0, window_bounds = array<i64: 8, 32>}, {transform_indices = @transform_1, window_bounds = array<i64: 8, 32>}, {pipeline_mode = #tpu.pipeline_mode<synchronous>, transform_indices = @transform_2, window_bounds = array<i64: 32, 128>}, {pipeline_mode = #tpu.pipeline_mode<synchronous>, transform_indices = @transform_3, window_bounds = array<i64: 32, 128>}, {pipeline_mode = #tpu.pipeline_mode<synchronous>, transform_indices = @transform_4, window_bounds = array<i64: 1, 128>}, {transform_indices = @transform_5, window_bounds = array<i64: 8, 128>}, {transform_indices = @transform_6, window_bounds = array<i64: 1, 1, 128>}, {transform_indices = @transform_7, window_bounds = array<i64: 1, 1, 1>}]} {
    %c0 = arith.constant 0 : index
    %c0_0 = arith.constant 0 : index
    %0 = vector.load %arg1[%c0, %c0_0] : memref<8x32xf32, #tpu.memory_space<vmem>>, vector<8x32xf32>
    %1 = arith.truncf %0 : vector<8x32xf32> to vector<8x32xbf16>
    %c0_1 = arith.constant 0 : index
    %c0_2 = arith.constant 0 : index
    %2 = vector.load %arg2[%c0_1, %c0_2] : memref<8x32xf32, #tpu.memory_space<vmem>>, vector<8x32xf32>
    %3 = arith.truncf %2 : vector<8x32xf32> to vector<8x32xbf16>
    %c0_3 = arith.constant 0 : index
    %c0_4 = arith.constant 0 : index
    %4 = vector.load %arg3[%c0_3, %c0_4] : memref<32x128xbf16, #tpu.memory_space<vmem>>, vector<32x128xbf16>
    %cst = arith.constant dense<0.000000e+00> : vector<8x128xf32>
    %5 = tpu.matmul %1, %4, %cst {dimension_numbers = #tpu.dot_dimension_numbers<[1], [0], [0], [1], [0, 0, 1, 1], [], []>} : vector<8x32xbf16>, vector<32x128xbf16>, vector<8x128xf32> -> vector<8x128xf32>
    %c0_5 = arith.constant 0 : index
    %c0_6 = arith.constant 0 : index
    %6 = vector.load %arg4[%c0_5, %c0_6] : memref<32x128xbf16, #tpu.memory_space<vmem>>, vector<32x128xbf16>
    %cst_7 = arith.constant dense<0.000000e+00> : vector<8x128xf32>
    %7 = tpu.matmul %3, %6, %cst_7 {dimension_numbers = #tpu.dot_dimension_numbers<[1], [0], [0], [1], [0, 0, 1, 1], [], []>} : vector<8x32xbf16>, vector<32x128xbf16>, vector<8x128xf32> -> vector<8x128xf32>
    %8 = arith.addf %5, %7 : vector<8x128xf32>
    %c0_8 = arith.constant 0 : index
    %c0_9 = arith.constant 0 : index
    %9 = vector.load %arg5[%c0_8, %c0_9] : memref<1x128xf32, #tpu.memory_space<vmem>>, vector<1x128xf32>
    %10 = vector.broadcast %9 : vector<1x128xf32> to vector<8x128xf32>
    %11 = arith.addf %8, %10 : vector<8x128xf32>
    %12 = arith.truncf %11 : vector<8x128xf32> to vector<8x128xbf16>
    %c0_10 = arith.constant 0 : index
    %c0_11 = arith.constant 0 : index
    %13 = vector.load %arg6[%c0_10, %c0_11] : memref<8x128xbf16, #tpu.memory_space<vmem>>, vector<8x128xbf16>
    tpu.vector_store %arg6[%c0_10, %c0_11], %12 {strides = array<i32>} : memref<8x128xbf16, #tpu.memory_space<vmem>>, vector<8x128xbf16>,
    %cst_12 = arith.constant dense<0xFF800000> : vector<8xf32>
    %14 = vector.multi_reduction <maximumf>, %11, %cst_12 [1] : vector<8x128xf32> to vector<8xf32>
    %15 = vector.shape_cast %14 : vector<8xf32> to vector<8x1xf32>
    %16 = vector.broadcast %15 : vector<8x1xf32> to vector<8x128xf32>
    %17 = arith.subf %11, %16 : vector<8x128xf32>
    %18 = math.exp %17 : vector<8x128xf32>
    %cst_13 = arith.constant dense<0.000000e+00> : vector<8xf32>
    %19 = vector.multi_reduction <add>, %18, %cst_13 [1] : vector<8x128xf32> to vector<8xf32>
    %20 = vector.shape_cast %19 : vector<8xf32> to vector<8x1xf32>
    %21 = tpu.reciprocal %20 {approx = true} : vector<8x1xf32> -> vector<8x1xf32>
    %22 = vector.broadcast %21 : vector<8x1xf32> to vector<8x128xf32>
    %23 = arith.mulf %18, %22 : vector<8x128xf32>
    %24 = math.log %20 : vector<8x1xf32>
    %cst_14 = arith.constant 0.000000e+00 : f32
    %25 = vector.broadcast %cst_14 : f32 to vector<8x1xf32>
    %26 = arith.subf %25, %24 : vector<8x1xf32>
    %cst_15 = arith.constant 1.000000e+00 : f32
    %27 = vector.broadcast %cst_15 : f32 to vector<8x1xf32>
    %28 = arith.subf %27, %26 : vector<8x1xf32>
    %cst_16 = arith.constant -1.000000e+00 : f32
    %29 = vector.broadcast %cst_16 : f32 to vector<8x1xf32>
    %30 = arith.addf %28, %29 : vector<8x1xf32>
    %31 = arith.mulf %21, %30 : vector<8x1xf32>
    %cst_17 = arith.constant dense<0.000000e+00> : vector<128xf32>
    %32 = vector.multi_reduction <add>, %23, %cst_17 [0] : vector<8x128xf32> to vector<128xf32>
    %33 = vector.shape_cast %32 : vector<128xf32> to vector<1x128xf32>
    %34 = vector.shape_cast %33 : vector<1x128xf32> to vector<1x1x128xf32>
    %c0_18 = arith.constant 0 : index
    %c0_19 = arith.constant 0 : index
    %c0_20 = arith.constant 0 : index
    %35 = vector.load %arg7[%c0_18, %c0_19, %c0_20] : memref<1x1x128xf32, #tpu.memory_space<vmem>>, vector<1x1x128xf32>
    tpu.vector_store %arg7[%c0_18, %c0_19, %c0_20], %34 {strides = array<i32>} : memref<1x1x128xf32, #tpu.memory_space<vmem>>, vector<1x1x128xf32>,
    %cst_21 = arith.constant dense<0.000000e+00> : vector<1xf32>
    %36 = vector.multi_reduction <add>, %31, %cst_21 [0] : vector<8x1xf32> to vector<1xf32>
    %37 = vector.shape_cast %36 : vector<1xf32> to vector<1x1xf32>
    %38 = vector.shape_cast %37 : vector<1x1xf32> to vector<1x1x1xf32>
    %c0_22 = arith.constant 0 : index
    %c0_23 = arith.constant 0 : index
    %c0_24 = arith.constant 0 : index
    %39 = vector.load %arg8[%c0_22, %c0_23, %c0_24] : memref<1x1x1xf32, #tpu.memory_space<vmem>>, vector<1x1x1xf32>
    tpu.vector_store %arg8[%c0_22, %c0_23, %c0_24], %38 {strides = array<i32>} : memref<1x1x1xf32, #tpu.memory_space<vmem>>, vector<1x1x1xf32>,
    return
  }
  func.func @transform_0(%arg0: i32) -> (i32, i32) {
    %c0_i32 = arith.constant 0 : i32
    %c0_i32_0 = arith.constant 0 : i32
    return %arg0, %c0_i32 : i32, i32
  }
  func.func @transform_1(%arg0: i32) -> (i32, i32) {
    %c0_i32 = arith.constant 0 : i32
    %c0_i32_0 = arith.constant 0 : i32
    return %arg0, %c0_i32 : i32, i32
  }
  func.func @transform_2(%arg0: i32) -> (i32, i32) {
    %c0_i32 = arith.constant 0 : i32
    %c0_i32_0 = arith.constant 0 : i32
    %c0_i32_1 = arith.constant 0 : i32
    return %c0_i32, %c0_i32_0 : i32, i32
  }
  func.func @transform_3(%arg0: i32) -> (i32, i32) {
    %c0_i32 = arith.constant 0 : i32
    %c0_i32_0 = arith.constant 0 : i32
    %c0_i32_1 = arith.constant 0 : i32
    return %c0_i32, %c0_i32_0 : i32, i32
  }
  func.func @transform_4(%arg0: i32) -> (i32, i32) {
    %c0_i32 = arith.constant 0 : i32
    %c0_i32_0 = arith.constant 0 : i32
    %c0_i32_1 = arith.constant 0 : i32
    return %c0_i32, %c0_i32_0 : i32, i32
  }
  func.func @transform_5(%arg0: i32) -> (i32, i32) {
    %c0_i32 = arith.constant 0 : i32
    %c0_i32_0 = arith.constant 0 : i32
    return %arg0, %c0_i32 : i32, i32
  }
  func.func @transform_6(%arg0: i32) -> (i32, i32, i32) {
    %c0_i32 = arith.constant 0 : i32
    %c0_i32_0 = arith.constant 0 : i32
    %c0_i32_1 = arith.constant 0 : i32
    return %arg0, %c0_i32, %c0_i32_0 : i32, i32, i32
  }
  func.func @transform_7(%arg0: i32) -> (i32, i32, i32) {
    %c0_i32 = arith.constant 0 : i32
    %c0_i32_0 = arith.constant 0 : i32
    %c0_i32_1 = arith.constant 0 : i32
    return %arg0, %c0_i32, %c0_i32_0 : i32, i32, i32
  }
}

</mosaic_0001>

<llo_original>
// kernel: read_forward.1
$region0: #{read_forward.1}
  #allocation0 [shape = 'u32[]', space=smem, size = 0x4, offset = 0x4, fixed_abs, tag = 'smem constant byte address 0x4 - core index']
  #allocation1 [shape = 'u32[72,128]{1,0:T(1,128)}', space=vmem, size = 0x9000, scoped, tag = 'internal scratch']
  %s0 = inlined_call_operand.hbm [shape: f32[8,32], index: 0, kind: input, shape index: {}]
  %s1 = inlined_call_operand.hbm [shape: f32[8,32], index: 1, kind: input, shape index: {}]
  %s2 = inlined_call_operand.hbm [shape: bf16[32,128], index: 2, kind: input, shape index: {}]
  %s3 = inlined_call_operand.hbm [shape: bf16[32,128], index: 3, kind: input, shape index: {}]
  %s4 = inlined_call_operand.hbm [shape: f32[1,128], index: 4, kind: input, shape index: {}]
  %s5 = inlined_call_operand.hbm [shape: bf16[8,128], index: 5, kind: output, shape index: {0}]
  %s6 = inlined_call_operand.vmem [shape: f32[1,1,128], index: 6, kind: output, shape index: {1}]
  %s7 = inlined_call_operand.hbm [shape: f32[1,1,1], index: 7, kind: output, shape index: {2}]
  %8 = xla_tuple %s5, %s6, %s7
  %s9 = sld [smem:[#allocation0]]
  $region66: #{read_forward.1} parent=0
    _
  %s11 = ssub.s32 1, %s9
  %s12 = scalar_select 0, %s11, %s9
  $region1: #{read_forward.1} parent=0
    #allocation2 [shape = 'u8[4096]{0}', space=vmem, size = 0x1000, scoped, tag = 'input window, operand 0, single buffered']
    #allocation3 [shape = 's32[1]{0}', space=sflag, size = 0x4, scoped, tag = 'scoped memory for read_forward.1']
    #allocation4 [shape = 's32[1]{0}', space=sflag, size = 0x4, scoped, tag = 'scoped memory for read_forward.1']
    #allocation5 [shape = 'u8[4096]{0}', space=vmem, size = 0x1000, scoped, tag = 'input window, operand 1, single buffered']
    #allocation6 [shape = 's32[1]{0}', space=sflag, size = 0x4, scoped, tag = 'scoped memory for read_forward.1']
    #allocation7 [shape = 'u8[8192]{0}', space=vmem, size = 0x2000, scoped, tag = 'input window, operand 2, single buffered']
    #allocation8 [shape = 'u8[8192]{0}', space=vmem, size = 0x2000, scoped, tag = 'input window, operand 3, single buffered']
    #allocation9 [shape = 's32[1]{0}', space=sflag, size = 0x4, scoped, tag = 'scoped memory for read_forward.1']
    #allocation10 [shape = 'u8[512]{0}', space=vmem, size = 0x400, scoped, tag = 'input window, operand 4, single buffered']
    #allocation11 [shape = 'u8[2048]{0}', space=vmem, size = 0x800, scoped, tag = 'output window, operand 0, single buffered']
    #allocation12 [shape = 'u8[512]{0}', space=vmem, size = 0x400, scoped, tag = 'output window, operand 2, single buffered']
    #allocation13 [shape = 's32[1]{0}', space=sflag, size = 0x4, scoped, tag = 'scoped memory for read_forward.1']
    %13 = vsyncpa [#allocation3], 0
    %14 = vsyncpa [#allocation6], 0
    %15 = vsyncpa [#allocation9], 0
    %16 = vsyncpa [#allocation4], 0
    %17 = vsyncpa [#allocation13], 0
    // Predicated region
    $region2: #{read_forward.1} parent=1 // pred_check
      _
    $region3: #{read_forward.1} parent=1 // pred_check_branch
      %19 = sbr.rel (0) target = $region5
    $region4: #{read_forward.1} parent=1 // pred_region
      %21 = vsyncadd [#allocation3], 0
      %s23 = sshll.u32 %s0, 4
      %s24 = int_to_ptr.hbm [resolvable:$true] %s23
      %s25 = sshll.u32 [#allocation2], 4
      %s26 = int_to_ptr.vmem [resolvable:$true] %s25
      %28 = dma.hbm_to_vmem [thread:$0]  %s24, 128, %s26, [#allocation3]
    $region5: #{read_forward.1} parent=1 // pred_fallthru
      _
    // Predicated region
    $region6: #{read_forward.1} parent=1 // pred_check
      _
    $region7: #{read_forward.1} parent=1 // pred_check_branch
      %30 = sbr.rel (0) target = $region9
    $region8: #{read_forward.1} parent=1 // pred_region
      %32 = vsyncadd [#allocation6], 0
      %s34 = sshll.u32 %s1, 4
      %s35 = int_to_ptr.hbm [resolvable:$true] %s34
      %s36 = sshll.u32 [#allocation5], 4
      %s37 = int_to_ptr.vmem [resolvable:$true] %s36
      %39 = dma.hbm_to_vmem [thread:$0]  %s35, 128, %s37, [#allocation6]
    $region9: #{read_forward.1} parent=1 // pred_fallthru
      _
    // Predicated region
    $region10: #{read_forward.1} parent=1 // pred_check
      _
    $region11: #{read_forward.1} parent=1 // pred_check_branch
      %41 = sbr.rel (0) target = $region13
    $region12: #{read_forward.1} parent=1 // pred_region
      %43 = vsyncadd [#allocation6], 0
      %s44 = sshll.u32 %s2, 4
      %s45 = int_to_ptr.hbm [resolvable:$true] %s44
      %s46 = sshll.u32 [#allocation7], 4
      %s47 = int_to_ptr.vmem [resolvable:$true] %s46
      %52 = dma.hbm_to_vmem [thread:$0]  %s45, 256, %s47, [#allocation6], 64, 64, 4
    $region13: #{read_forward.1} parent=1 // pred_fallthru
      _
    // Predicated region
    $region14: #{read_forward.1} parent=1 // pred_check
      _
    $region15: #{read_forward.1} parent=1 // pred_check_branch
      %54 = sbr.rel (0) target = $region17
    $region16: #{read_forward.1} parent=1 // pred_region
      %56 = vsyncadd [#allocation9], 0
      %s57 = sshll.u32 %s3, 4
      %s58 = int_to_ptr.hbm [resolvable:$true] %s57
      %s59 = sshll.u32 [#allocation8], 4
      %s60 = int_to_ptr.vmem [resolvable:$true] %s59
      %65 = dma.hbm_to_vmem [thread:$0]  %s58, 256, %s60, [#allocation9], 64, 64, 4
    $region17: #{read_forward.1} parent=1 // pred_fallthru
      _
    // Predicated region
    $region18: #{read_forward.1} parent=1 // pred_check
      _
    $region19: #{read_forward.1} parent=1 // pred_check_branch
      %67 = sbr.rel (0) target = $region21
    $region20: #{read_forward.1} parent=1 // pred_region
      %69 = vsyncadd [#allocation9], 0
      %s71 = sshll.u32 %s4, 4
      %s72 = int_to_ptr.hbm [resolvable:$true] %s71
      %s73 = sshll.u32 [#allocation10], 4
      %s74 = int_to_ptr.vmem [resolvable:$true] %s73
      %76 = dma.hbm_to_vmem [thread:$0]  %s72, 16, %s74, [#allocation9]
    $region21: #{read_forward.1} parent=1 // pred_fallthru
      _
    // Predicated region
    $region22: #{read_forward.1} parent=1 // pred_check
      _
    $region23: #{read_forward.1} parent=1 // pred_check_branch
      %78 = sbr.rel (0) target = $region25
    $region24: #{read_forward.1} parent=1 // pred_region
      %80 = dma.done [#allocation3], 128
    $region25: #{read_forward.1} parent=1 // pred_fallthru
      _
    // Predicated region
    $region26: #{read_forward.1} parent=1 // pred_check
      _
    $region27: #{read_forward.1} parent=1 // pred_check_branch
      %82 = sbr.rel (0) target = $region29
    $region28: #{read_forward.1} parent=1 // pred_region
      %84 = dma.done [#allocation6], 128
    $region29: #{read_forward.1} parent=1 // pred_fallthru
      _
    // Predicated region
    $region30: #{read_forward.1} parent=1 // pred_check
      _
    $region31: #{read_forward.1} parent=1 // pred_check_branch
      %86 = sbr.rel (0) target = $region33
    $region32: #{read_forward.1} parent=1 // pred_region
      %88 = dma.done [#allocation6], 256
    $region33: #{read_forward.1} parent=1 // pred_fallthru
      _
    // Predicated region
    $region34: #{read_forward.1} parent=1 // pred_check
      _
    $region35: #{read_forward.1} parent=1 // pred_check_branch
      %90 = sbr.rel (0) target = $region37
    $region36: #{read_forward.1} parent=1 // pred_region
      %92 = dma.done [#allocation9], 256
    $region37: #{read_forward.1} parent=1 // pred_fallthru
      _
    // Predicated region
    $region38: #{read_forward.1} parent=1 // pred_check
      _
    $region39: #{read_forward.1} parent=1 // pred_check_branch
      %94 = sbr.rel (0) target = $region41
    $region40: #{read_forward.1} parent=1 // pred_region
      %96 = dma.done [#allocation9], 16
    $region41: #{read_forward.1} parent=1 // pred_fallthru
      _
    %v98 = vld [vmem:[#allocation2] sm:$0xff]
    %v99 = vpack.c.bf16 %v98, %v98
    %v100 = vld [vmem:[#allocation5] sm:$0xff]
    %v101 = vpack.c.bf16 %v100, %v100
    %v102 = vld [vmem:[#allocation7] sm:$0xf]
    %v103 = vld [vmem:[#allocation7 + $0x4] sm:$0xf]
    %v104 = vld [vmem:[#allocation7 + $0x8] sm:$0xf]
    %v105 = vld [vmem:[#allocation7 + $0xc] sm:$0xf]
    %v106 = vld [vmem:[#allocation8] sm:$0xf]
    %v107 = vld [vmem:[#allocation8 + $0x4] sm:$0xf]
    %v108 = vld [vmem:[#allocation8 + $0x8] sm:$0xf]
    %v109 = vld [vmem:[#allocation8 + $0xc] sm:$0xf]
    %v114 = vunpack.c.l.b16 %v106
    %v115 = vunpack.c.l.b16 %v107
    %v116 = vunpack.c.l.b16 %v108
    %v117 = vunpack.c.l.b16 %v109
    %v118 = vpack.c.b16 %v115, %v114
    %v119 = vpack.c.b16 %v117, %v116
    %vm122 = vcmask 261120
    %v124 = vsel %vm122, %v101, 0
    %126 = vmatpush.bf16.msra.mxu0 0
    %127 = vmatpush.bf16.msra.mxu0 0
    %128 = vmatpush.bf16.msra.mxu0 0
    %129 = vmatpush.bf16.msra.mxu0 0
    %130 = vmatpush.bf16.msra.mxu0 0
    %131 = vmatpush.bf16.msra.mxu0 0
    %132 = vmatpush.bf16.msra.mxu0 %v119
    %133 = vmatpush.bf16.msra.mxu0 %v118
    %134 = vmatmul.bf16.gmra.mxu0 %v124
    %v135 = vpop.f32.mrf.mxu0
    %v136 = vadd.f32 0.0, %v135
    %v137 = vpop.f32.mrf.mxu0
    %138 = vdwg.mxu0
    %v143 = vunpack.c.l.b16 %v102
    %v144 = vunpack.c.l.b16 %v103
    %v145 = vunpack.c.l.b16 %v104
    %v146 = vunpack.c.l.b16 %v105
    %v147 = vpack.c.b16 %v144, %v143
    %v148 = vpack.c.b16 %v146, %v145
    %v152 = vsel %vm122, %v99, 0
    %154 = vmatpush.bf16.msra.mxu0 0
    %155 = vmatpush.bf16.msra.mxu0 0
    %156 = vmatpush.bf16.msra.mxu0 0
    %157 = vmatpush.bf16.msra.mxu0 0
    %158 = vmatpush.bf16.msra.mxu0 0
    %159 = vmatpush.bf16.msra.mxu0 0
    %160 = vmatpush.bf16.msra.mxu0 %v148
    %161 = vmatpush.bf16.msra.mxu0 %v147
    %162 = vmatmul.bf16.gmra.mxu0 %v152
    %v163 = vpop.f32.mrf.mxu0
    %v164 = vadd.f32 %v136, %v163
    %v165 = vpop.f32.mrf.mxu0
    %166 = vdwg.mxu0
    %v167 = vld [vmem:[#allocation10] sm:$0x1]
    %v169 = vperm.slane %v167, 0
    %v171 = vadd.f32 %v164, %v169
    %v172 = vpack.c.bf16 %v171, %v171
    %173 = vst [vmem:[#allocation11] sm:$0xf] %v172
    %174 = vmax.xlane.f32.xlu0 %v171
    %v175 = vpop.xlane.xlu0 %174
    %v176 = vsub.f32 %v171, %v175
    %v177 = vmul.f32 %v176, 1.442695
    %v178 = vpow.pop %v177
    %179 = vadd.xlane.f32.xlu0 %v178
    %v180 = vpop.xlane.xlu0 %179
    %v181 = vrcp.pop %v180
    %v182 = vmul.f32 %v178, %v181
    %v183 = vlog2.pop %v180
    %v184 = vmul.f32 %v183, 0.6931472
    %v185 = vsub.f32 0.0, %v184
    %v186 = vsub.f32 1.0, %v185
    %v187 = vadd.f32 %v186, -1.0
    %v188 = vmul.f32 %v181, %v187
    %v189 = vrot.slane %v182, 4
    %v190 = vadd.f32 %v182, %v189
    %v191 = vrot.slane %v190, 2
    %v192 = vadd.f32 %v190, %v191
    %v193 = vrot.slane %v192, 1
    %v194 = vadd.f32 %v192, %v193
    %195 = vst [vmem:[%s6] sm:$0x1] %v194
    %v196 = vrot.slane %v188, 4
    %v197 = vadd.f32 %v188, %v196
    %v198 = vrot.slane %v197, 2
    %v199 = vadd.f32 %v197, %v198
    %v200 = vrot.slane %v199, 1
    %v201 = vadd.f32 %v199, %v200
    %vm202 = vcmask 0
    %203 = vst.msk [vmem:[#allocation12] sm:$0x1] %vm202, %v201
    // Predicated region
    $region42: #{read_forward.1} parent=1 // pred_check
      _
    $region43: #{read_forward.1} parent=1 // pred_check_branch
      %205 = sbr.rel (0) target = $region45
    $region44: #{read_forward.1} parent=1 // pred_region
      %207 = vsyncadd [#allocation4], 0
      %s209 = sshll.u32 [#allocation11], 4
      %s210 = int_to_ptr.vmem [resolvable:$true] %s209
      %s211 = sshll.u32 %s5, 4
      %s212 = int_to_ptr.hbm [resolvable:$true] %s211
      %214 = dma.vmem_to_hbm [thread:$0]  %s210, 64, %s212, [#allocation4]
    $region45: #{read_forward.1} parent=1 // pred_fallthru
      _
    // Predicated region
    $region46: #{read_forward.1} parent=1 // pred_check
      _
    $region47: #{read_forward.1} parent=1 // pred_check_branch
      %216 = sbr.rel (0) target = $region49
    $region48: #{read_forward.1} parent=1 // pred_region
      _
    $region49: #{read_forward.1} parent=1 // pred_fallthru
      _
    // Predicated region
    $region50: #{read_forward.1} parent=1 // pred_check
      _
    $region51: #{read_forward.1} parent=1 // pred_check_branch
      %218 = sbr.rel (0) target = $region53
    $region52: #{read_forward.1} parent=1 // pred_region
      %220 = vsyncadd [#allocation13], 0
      %s222 = sshll.u32 [#allocation12], 4
      %s223 = int_to_ptr.vmem [resolvable:$true] %s222
      %s224 = sshll.u32 %s7, 4
      %s225 = int_to_ptr.hbm [resolvable:$true] %s224
      %227 = dma.vmem_to_hbm [thread:$0]  %s223, 16, %s225, [#allocation13]
    $region53: #{read_forward.1} parent=1 // pred_fallthru
      _
    // Predicated region
    $region54: #{read_forward.1} parent=1 // pred_check
      _
    $region55: #{read_forward.1} parent=1 // pred_check_branch
      %229 = sbr.rel (0) target = $region57
    $region56: #{read_forward.1} parent=1 // pred_region
      %231 = dma.done [#allocation4], 64
    $region57: #{read_forward.1} parent=1 // pred_fallthru
      _
    // Predicated region
    $region58: #{read_forward.1} parent=1 // pred_check
      _
    $region59: #{read_forward.1} parent=1 // pred_check_branch
      %233 = sbr.rel (0) target = $region61
    $region60: #{read_forward.1} parent=1 // pred_region
      _
    $region61: #{read_forward.1} parent=1 // pred_fallthru
      _
    // Predicated region
    $region62: #{read_forward.1} parent=1 // pred_check
      _
    $region63: #{read_forward.1} parent=1 // pred_check_branch
      %235 = sbr.rel (0) target = $region65
    $region64: #{read_forward.1} parent=1 // pred_region
      %237 = dma.done [#allocation13], 16
    $region65: #{read_forward.1} parent=1 // pred_fallthru
      _
    %238 = vsyncpa [#allocation3], 1
    %239 = vsyncpa [#allocation6], 1
    %240 = vsyncpa [#allocation9], 1
    %241 = vsyncpa [#allocation4], 1
    %242 = vsyncpa [#allocation13], 1

</llo_original>
